<compile_context>
chip_gen: v7x
topology: tpu7x:2x2x1
jax: 0.10.0
libtpu: 0.0.40
codegen_flags: <defaults>
</compile_context>

<pallas_src>
import jax
import jax.numpy as jnp
from jax.experimental import pallas as pl
from jax.experimental.pallas import tpu as pltpu


def _ca_kernel(x_ref, w1t_ref, b1_ref, w2t_ref, b2_ref, o_ref):
    """Fused pool -> fc1 -> relu -> fc2 -> sigmoid -> scale for one batch block."""
    # Spatial sum (the 1/(H*W) mean scale is folded into w1t by the wrapper).
    pooled = jnp.sum(x_ref[...].astype(jnp.float32), axis=-1)            # (Bt, C)

    # fc1 (1x1 conv) + ReLU, batched across the block: (Bt,C)@(C,Cr).
    h = jnp.dot(pooled, w1t_ref[...],
                preferred_element_type=jnp.float32) + b1_ref[...]        # (Bt, Cr)
    h = jnp.maximum(h, 0.0)

    # fc2 (1x1 conv) + sigmoid: (Bt,Cr)@(Cr,C).
    s = jax.nn.sigmoid(
        jnp.dot(h, w2t_ref[...],
                preferred_element_type=jnp.float32) + b2_ref[...])       # (Bt, C)

    # Re-read x from VMEM for the scale (cheap: vld slots have huge slack under
    # the HBM roofline) rather than keeping a huge live value across the FCs.
    o_ref[...] = (x_ref[...].astype(jnp.float32) * s[:, :, None]).astype(o_ref.dtype)


def ca_module_pallas(x_nchw, w1, b1, w2, b2):
    """x_nchw: (B, C, H, W); w1: (Cr, C); b1: (Cr,); w2: (C, Cr); b2: (C,)."""
    B, C, H, W = x_nchw.shape
    Cr = w1.shape[0]
    HW = H * W
    itemsize = jnp.dtype(x_nchw.dtype).itemsize

    # Free (metadata-only) reshape of a contiguous row-major array.
    x_flat = x_nchw.reshape(B, C, HW)

    # Fold the mean scale into fc1 and pre-transpose so the in-kernel matmuls
    # are lane-dense (Bt,C)@(C,Cr) and (Bt,Cr)@(Cr,C).
    w1t = (w1.astype(jnp.float32) * (1.0 / HW)).T                 # (C, Cr)
    w2t = w2.astype(jnp.float32).T                                # (Cr, C)
    b1_row = b1.reshape(1, Cr).astype(jnp.float32)
    b2_row = b2.reshape(1, C).astype(jnp.float32)

    # Per-generation VMEM capacity (v5e/v6e: 128 MiB, v7x: 64 MiB per core).
    try:
        vmem_cap = int(pltpu.get_tpu_info().vmem_capacity_bytes)
    except Exception:
        vmem_cap = 64 * 1024 * 1024   # conservative fallback (v7x per core)

    # Pick Bt as a divisor of B (no batch-pad HBM pass), keeping the 2-in +
    # 2-out double-buffered footprint under ~40% of VMEM, and preferring an
    # even grid-step count so v7x megacore sharding balances both TCs.
    bytes_per_batch = C * HW * itemsize
    bt_cap = max(1, int(vmem_cap * 0.4) // (4 * bytes_per_batch))
    divisors = [d for d in range(1, B + 1) if B % d == 0 and d <= bt_cap]
    even_steps = [d for d in divisors if (B // d) % 2 == 0]
    Bt = max(even_steps) if even_steps else max(divisors)
    grid = (B // Bt,)
    # TODO(synk): if a single batch's (C, HW) slab ever exceeds the VMEM budget
    # (possible on v7x for very large C*HW), add an inner spatial pipeline
    # (pltpu.emit_pipeline over (C, tHW) chunks: pool pass then scale pass).

    vmem_needed = 4 * Bt * bytes_per_batch + 8 * (C * Cr + C + Cr) * 4
    vmem_limit = max(vmem_needed + (2 << 20), 16 << 20)
    vmem_limit = min(vmem_limit, int(vmem_cap * 0.75))
    vmem_limit = max(vmem_limit, vmem_needed + (1 << 20))

    out_flat = pl.pallas_call(
        _ca_kernel,
        out_shape=jax.ShapeDtypeStruct((B, C, HW), x_nchw.dtype),
        grid_spec=pltpu.PrefetchScalarGridSpec(
            num_scalar_prefetch=0,
            grid=grid,
            in_specs=[
                pl.BlockSpec((Bt, C, HW), lambda i: (i, 0, 0)),   # x slab (full C, HW)
                pl.BlockSpec((C, Cr), lambda i: (0, 0)),          # w1t (full)
                pl.BlockSpec((1, Cr), lambda i: (0, 0)),          # b1
                pl.BlockSpec((Cr, C), lambda i: (0, 0)),          # w2t (full)
                pl.BlockSpec((1, C), lambda i: (0, 0)),           # b2
            ],
            out_specs=pl.BlockSpec((Bt, C, HW), lambda i: (i, 0, 0)),
        ),
        compiler_params=pltpu.CompilerParams(
            dimension_semantics=("parallel",),
            vmem_limit_bytes=int(vmem_limit),
        ),
    )(x_flat, w1t, b1_row, w2t, b2_row)

    # Free reshape back to NCHW; no slicing needed (nothing was padded).
    return out_flat.reshape(B, C, H, W)


def ca_module_ref(x_nchw, w1, b1, w2, b2):
    """Pure-JAX reference mirroring the PyTorch forward (f32 math)."""
    xf = x_nchw.astype(jnp.float32)
    pooled = jnp.mean(xf, axis=(2, 3))                            # (B, C)
    h = jnp.maximum(pooled @ w1.T + b1, 0.0)                      # (B, Cr)
    s = jax.nn.sigmoid(h @ w2.T + b2)                             # (B, C)
    return xf * s[:, :, None, None]


def _run_case(key, B, C, reduction, H, W, dtype=jnp.float32, atol=1e-5, rtol=1e-5):
    Cr = C // reduction
    kx, k1, k2, k3, k4 = jax.random.split(key, 5)
    x = jax.random.normal(kx, (B, C, H, W), dtype=jnp.float32).astype(dtype)
    w1 = jax.random.normal(k1, (Cr, C), dtype=jnp.float32) * 0.1
    b1 = jax.random.normal(k2, (Cr,), dtype=jnp.float32) * 0.1
    w2 = jax.random.normal(k3, (C, Cr), dtype=jnp.float32) * 0.1
    b2 = jax.random.normal(k4, (C,), dtype=jnp.float32) * 0.1

    out = jax.block_until_ready(ca_module_pallas(x, w1, b1, w2, b2))
    ref = ca_module_ref(x, w1, b1, w2, b2)
    assert out.shape == (B, C, H, W)
    assert out.dtype == dtype
    assert jnp.allclose(out.astype(jnp.float32), ref, atol=atol, rtol=rtol), \
        f"mismatch vs reference for shape {(B, C, H, W)} dtype {dtype}"


if __name__ == "__main__":
    key = jax.random.PRNGKey(0)
    k_a, k_b, k_c = jax.random.split(key, 3)

    # Case 1: lane-aligned spatial (16*16 = 256); B=4 -> Bt=2, 2 grid steps
    # (even step count balances v7x's two TensorCores).
    _run_case(k_a, B=4, C=64, reduction=1, H=16, W=16)

    # Case 2: non-128-multiple spatial (15*15 = 225 -> masked last lane group,
    # no pad/slice passes), odd batch (B=3, no batch pad), reduction=2 (Cr=32).
    _run_case(k_b, B=3, C=64, reduction=2, H=15, W=15)

    # Case 3: bf16 activations preserved end to end (halves HBM traffic on a
    # bandwidth-bound op); pool/FC math stays f32 inside the kernel.
    _run_case(k_c, B=2, C=64, reduction=1, H=16, W=16,
              dtype=jnp.bfloat16, atol=3e-2, rtol=3e-2)

    print("KERNEL_OK")
</pallas_src>

<mosaic_0001>
module attributes {stable_mosaic.version = 11 : i64} {
  func.func @_ca_kernel(%arg0: i32, %arg1: memref<2x64x256xf32, #tpu.memory_space<vmem>>, %arg2: memref<64x64xf32, #tpu.memory_space<vmem>>, %arg3: memref<1x64xf32, #tpu.memory_space<vmem>>, %arg4: memref<64x64xf32, #tpu.memory_space<vmem>>, %arg5: memref<1x64xf32, #tpu.memory_space<vmem>>, %arg6: memref<2x64x256xf32, #tpu.memory_space<vmem>>) attributes {dimension_semantics = [#tpu.dimension_semantics<parallel>], iteration_bounds = array<i64: 2>, scalar_prefetch = 0 : i64, scratch_operands = 0 : i64, tpu.core_type = #tpu.core_type<tc>, window_params = [{transform_indices = @transform_0, window_bounds = array<i64: 2, 64, 256>}, {pipeline_mode = #tpu.pipeline_mode<synchronous>, transform_indices = @transform_1, window_bounds = array<i64: 64, 64>}, {pipeline_mode = #tpu.pipeline_mode<synchronous>, transform_indices = @transform_2, window_bounds = array<i64: 1, 64>}, {pipeline_mode = #tpu.pipeline_mode<synchronous>, transform_indices = @transform_3, window_bounds = array<i64: 64, 64>}, {pipeline_mode = #tpu.pipeline_mode<synchronous>, transform_indices = @transform_4, window_bounds = array<i64: 1, 64>}, {transform_indices = @transform_5, window_bounds = array<i64: 2, 64, 256>}]} {
    %c0 = arith.constant 0 : index
    %c0_0 = arith.constant 0 : index
    %c0_1 = arith.constant 0 : index
    %0 = vector.load %arg1[%c0, %c0_0, %c0_1] : memref<2x64x256xf32, #tpu.memory_space<vmem>>, vector<2x64x256xf32>
    %cst = arith.constant dense<0.000000e+00> : vector<2x64xf32>
    %1 = vector.multi_reduction <add>, %0, %cst [2] : vector<2x64x256xf32> to vector<2x64xf32>
    %c0_2 = arith.constant 0 : index
    %c0_3 = arith.constant 0 : index
    %2 = vector.load %arg2[%c0_2, %c0_3] : memref<64x64xf32, #tpu.memory_space<vmem>>, vector<64x64xf32>
    %cst_4 = arith.constant dense<0.000000e+00> : vector<2x64xf32>
    %3 = tpu.matmul %1, %2, %cst_4 {dimension_numbers = #tpu.dot_dimension_numbers<[1], [0], [0], [1], [0, 0, 1, 1], [], []>} : vector<2x64xf32>, vector<64x64xf32>, vector<2x64xf32> -> vector<2x64xf32>
    %c0_5 = arith.constant 0 : index
    %c0_6 = arith.constant 0 : index
    %4 = vector.load %arg3[%c0_5, %c0_6] : memref<1x64xf32, #tpu.memory_space<vmem>>, vector<1x64xf32>
    %5 = vector.broadcast %4 : vector<1x64xf32> to vector<2x64xf32>
    %6 = arith.addf %3, %5 : vector<2x64xf32>
    %cst_7 = arith.constant 0.000000e+00 : f32
    %7 = vector.broadcast %cst_7 : f32 to vector<2x64xf32>
    %8 = arith.maximumf %6, %7 : vector<2x64xf32>
    %c0_8 = arith.constant 0 : index
    %c0_9 = arith.constant 0 : index
    %9 = vector.load %arg4[%c0_8, %c0_9] : memref<64x64xf32, #tpu.memory_space<vmem>>, vector<64x64xf32>
    %cst_10 = arith.constant dense<0.000000e+00> : vector<2x64xf32>
    %10 = tpu.matmul %8, %9, %cst_10 {dimension_numbers = #tpu.dot_dimension_numbers<[1], [0], [0], [1], [0, 0, 1, 1], [], []>} : vector<2x64xf32>, vector<64x64xf32>, vector<2x64xf32> -> vector<2x64xf32>
    %c0_11 = arith.constant 0 : index
    %c0_12 = arith.constant 0 : index
    %11 = vector.load %arg5[%c0_11, %c0_12] : memref<1x64xf32, #tpu.memory_space<vmem>>, vector<1x64xf32>
    %12 = vector.broadcast %11 : vector<1x64xf32> to vector<2x64xf32>
    %13 = arith.addf %10, %12 : vector<2x64xf32>
    %14 = arith.negf %13 : vector<2x64xf32>
    %15 = math.exp %14 : vector<2x64xf32>
    %cst_13 = arith.constant 1.000000e+00 : f32
    %16 = vector.broadcast %cst_13 : f32 to vector<2x64xf32>
    %17 = arith.addf %16, %15 : vector<2x64xf32>
    %18 = arith.divf %16, %17 : vector<2x64xf32>
    %c0_14 = arith.constant 0 : index
    %c0_15 = arith.constant 0 : index
    %c0_16 = arith.constant 0 : index
    %19 = vector.load %arg1[%c0_14, %c0_15, %c0_16] : memref<2x64x256xf32, #tpu.memory_space<vmem>>, vector<2x64x256xf32>
    %20 = vector.shape_cast %18 : vector<2x64xf32> to vector<2x64x1xf32>
    %21 = vector.broadcast %20 : vector<2x64x1xf32> to vector<2x64x256xf32>
    %22 = arith.mulf %19, %21 : vector<2x64x256xf32>
    %c0_17 = arith.constant 0 : index
    %c0_18 = arith.constant 0 : index
    %c0_19 = arith.constant 0 : index
    %23 = vector.load %arg6[%c0_17, %c0_18, %c0_19] : memref<2x64x256xf32, #tpu.memory_space<vmem>>, vector<2x64x256xf32>
    tpu.vector_store %arg6[%c0_17, %c0_18, %c0_19], %22 {strides = array<i32>} : memref<2x64x256xf32, #tpu.memory_space<vmem>>, vector<2x64x256xf32>,
    return
  }
  func.func @transform_0(%arg0: i32) -> (i32, i32, i32) {
    %c0_i32 = arith.constant 0 : i32
    %c0_i32_0 = arith.constant 0 : i32
    %c0_i32_1 = arith.constant 0 : i32
    return %arg0, %c0_i32, %c0_i32_0 : i32, i32, i32
  }
  func.func @transform_1(%arg0: i32) -> (i32, i32) {
    %c0_i32 = arith.constant 0 : i32
    %c0_i32_0 = arith.constant 0 : i32
    %c0_i32_1 = arith.constant 0 : i32
    return %c0_i32, %c0_i32_0 : i32, i32
  }
  func.func @transform_2(%arg0: i32) -> (i32, i32) {
    %c0_i32 = arith.constant 0 : i32
    %c0_i32_0 = arith.constant 0 : i32
    %c0_i32_1 = arith.constant 0 : i32
    return %c0_i32, %c0_i32_0 : i32, i32
  }
  func.func @transform_3(%arg0: i32) -> (i32, i32) {
    %c0_i32 = arith.constant 0 : i32
    %c0_i32_0 = arith.constant 0 : i32
    %c0_i32_1 = arith.constant 0 : i32
    return %c0_i32, %c0_i32_0 : i32, i32
  }
  func.func @transform_4(%arg0: i32) -> (i32, i32) {
    %c0_i32 = arith.constant 0 : i32
    %c0_i32_0 = arith.constant 0 : i32
    %c0_i32_1 = arith.constant 0 : i32
    return %c0_i32, %c0_i32_0 : i32, i32
  }
  func.func @transform_5(%arg0: i32) -> (i32, i32, i32) {
    %c0_i32 = arith.constant 0 : i32
    %c0_i32_0 = arith.constant 0 : i32
    %c0_i32_1 = arith.constant 0 : i32
    return %arg0, %c0_i32, %c0_i32_0 : i32, i32, i32
  }
}

</mosaic_0001>

<llo_original>
// kernel: tpu_custom_call.1
$region0: #{tpu_custom_call.1}
  #allocation0 [shape = 'u32[]', space=smem, size = 0x4, offset = 0x4, fixed_abs, tag = 'smem constant byte address 0x4 - core index']
  #allocation1 [shape = 'u32[144,128]{1,0:T(1,128)}', space=vmem, size = 0x12000, scoped, tag = 'internal scratch']
  %s0 = inlined_call_operand.hbm [shape: f32[4,64,256], index: 0, kind: input, shape index: {}]
  %s1 = inlined_call_operand.hbm [shape: f32[64,64], index: 1, kind: input, shape index: {}]
  %s2 = inlined_call_operand.vmem [shape: f32[1,64], index: 2, kind: input, shape index: {}]
  %s3 = inlined_call_operand.hbm [shape: f32[64,64], index: 3, kind: input, shape index: {}]
  %s4 = inlined_call_operand.vmem [shape: f32[1,64], index: 4, kind: input, shape index: {}]
  %s5 = inlined_call_operand.hbm [shape: f32[4,64,256], index: 5, kind: output, shape index: {}]
  %s6 = sld [smem:[#allocation0]]
  $region65: #{tpu_custom_call.1} parent=0
    _
  %s8 = ssub.s32 1, %s6
  %s9 = scalar_select 0, %s8, %s6
  $region1: #{tpu_custom_call.1} parent=0
    #allocation2 [shape = 'u8[262144]{0}', space=vmem, size = 0x40000, scoped, tag = 'input window, operand 0']
    #allocation3 [shape = 's32[2]{0}', space=sflag, size = 0x8, scoped, tag = 'scoped memory for tpu_custom_call.1']
    #allocation4 [shape = 's32[2]{0}', space=sflag, size = 0x8, scoped, tag = 'scoped memory for tpu_custom_call.1']
    #allocation5 [shape = 'u8[32768]{0}', space=vmem, size = 0x8000, scoped, tag = 'input window, operand 1, single buffered']
    #allocation6 [shape = 's32[1]{0}', space=sflag, size = 0x4, scoped, tag = 'scoped memory for tpu_custom_call.1']
    #allocation7 [shape = 'u8[32768]{0}', space=vmem, size = 0x8000, scoped, tag = 'input window, operand 3, single buffered']
    #allocation8 [shape = 'u8[262144]{0}', space=vmem, size = 0x40000, scoped, tag = 'output window, operand 0']
    %10 = vsyncpa [#allocation3], 0
    %s11 = scalar_lea.sflag [#allocation3], 1
    %12 = vsyncpa %s11, 0
    %13 = vsyncpa [#allocation6], 0
    %14 = vsyncpa [#allocation4], 0
    %s15 = scalar_lea.sflag [#allocation4], 1
    %16 = vsyncpa %s15, 0
    loop: start=0, step=1, limit=4
    $region2: #{tpu_custom_call.1} parent=1 // loop_pre_header
      _
    $region3: #{tpu_custom_call.1} parent=1 // loop_header
      %s18 = sphi 0, %s22
      %p19 = scmp.ge.s32.totalorder %s18, 4
      %s28 = sphi 0, %s30
      %s31 = sphi 0, %s28
      %s32 = sphi 0, %s31
      %s48 = sphi 0, %s32
      %s52 = sphi 0, %s52
      %s54 = sphi 0, %s52
      %s55 = sphi 0, %s54
      %s69 = sphi 0, %s55
      %s73 = sphi 0, %s73
      %s75 = sphi 0, %s73
      %s76 = sphi 0, %s75
      %s90 = sphi 0, %s76
      %s94 = sphi 0, %s94
      %s96 = sphi 0, %s94
      %s97 = sphi 0, %s96
      %s111 = sphi 0, %s97
      %s115 = sphi 0, %s115
      %s117 = sphi 0, %s115
      %s118 = sphi 0, %s117
      %s132 = sphi 0, %s118
      %s138 = sphi 0, %s140
      %s141 = sphi 0, %s138
      %s142 = sphi 0, %s141
      %s158 = sphi 0, %s142
    $region4: #{tpu_custom_call.1} parent=1 // loop_header_branch
      %21 = sbr.rel (%p19) target = $region8
    $region5: #{tpu_custom_call.1} parent=1 // loop_body
      %s23 = ssub.s32 %s18, 1
      %s24 = ssub.s32 %s18, 2
      %s25 = sadd.s32 %s18, 1
      %s26 = ssub.s32 %s18, %s25
      %p27 = scmp.eq.s32.totalorder %s26, 0
      %s29 = sadd.s32 %s28, 1
      %s30 = scalar_select %p27, %s28, %s29
      %p33 = pneg %p27
      %p34 = scmp.eq.s32.totalorder %s18, 1
      %p35 = por %p33, %p34
      %p36 = scmp.ne.s32.totalorder %s28, %s31
      %p37 = scmp.eq.s32.totalorder %s18, 0
      %p38 = por %p36, %p37
      %p39 = scmp.ne.s32.totalorder %s28, %s31
      %p40 = scmp.eq.s32.totalorder %s23, 1
      %p41 = por %p39, %p40
      %p42 = scmp.ne.s32.totalorder %s31, %s32
      %p43 = scmp.eq.s32.totalorder %s23, 0
      %p44 = por %p42, %p43
      %p45 = scmp.ne.s32.totalorder %s31, %s32
      %p46 = scmp.eq.s32.totalorder %s24, 1
      %p47 = por %p45, %p46
      %p49 = scmp.ne.s32.totalorder %s32, %s48
      %p50 = scmp.eq.s32.totalorder %s24, 0
      %p51 = por %p49, %p50
      %s53 = sadd.s32 %s52, 1
      %p56 = scmp.eq.s32.totalorder %s18, 1
      %p57 = scmp.ne.s32.totalorder %s52, %s54
      %p58 = scmp.eq.s32.totalorder %s18, 0
      %p59 = por %p57, %p58
      %p60 = scmp.ne.s32.totalorder %s52, %s54
      %p61 = scmp.eq.s32.totalorder %s23, 1
      %p62 = por %p60, %p61
      %p63 = scmp.ne.s32.totalorder %s54, %s55
      %p64 = scmp.eq.s32.totalorder %s23, 0
      %p65 = por %p63, %p64
      %p66 = scmp.ne.s32.totalorder %s54, %s55
      %p67 = scmp.eq.s32.totalorder %s24, 1
      %p68 = por %p66, %p67
      %p70 = scmp.ne.s32.totalorder %s55, %s69
      %p71 = scmp.eq.s32.totalorder %s24, 0
      %p72 = por %p70, %p71
      %s74 = sadd.s32 %s73, 1
      %p77 = scmp.eq.s32.totalorder %s18, 1
      %p78 = scmp.ne.s32.totalorder %s73, %s75
      %p79 = scmp.eq.s32.totalorder %s18, 0
      %p80 = por %p78, %p79
      %p81 = scmp.ne.s32.totalorder %s73, %s75
      %p82 = scmp.eq.s32.totalorder %s23, 1
      %p83 = por %p81, %p82
      %p84 = scmp.ne.s32.totalorder %s75, %s76
      %p85 = scmp.eq.s32.totalorder %s23, 0
      %p86 = por %p84, %p85
      %p87 = scmp.ne.s32.totalorder %s75, %s76
      %p88 = scmp.eq.s32.totalorder %s24, 1
      %p89 = por %p87, %p88
      %p91 = scmp.ne.s32.totalorder %s76, %s90
      %p92 = scmp.eq.s32.totalorder %s24, 0
      %p93 = por %p91, %p92
      %s95 = sadd.s32 %s94, 1
      %p98 = scmp.eq.s32.totalorder %s18, 1
      %p99 = scmp.ne.s32.totalorder %s94, %s96
      %p100 = scmp.eq.s32.totalorder %s18, 0
      %p101 = por %p99, %p100
      %p102 = scmp.ne.s32.totalorder %s94, %s96
      %p103 = scmp.eq.s32.totalorder %s23, 1
      %p104 = por %p102, %p103
      %p105 = scmp.ne.s32.totalorder %s96, %s97
      %p106 = scmp.eq.s32.totalorder %s23, 0
      %p107 = por %p105, %p106
      %p108 = scmp.ne.s32.totalorder %s96, %s97
      %p109 = scmp.eq.s32.totalorder %s24, 1
      %p110 = por %p108, %p109
      %p112 = scmp.ne.s32.totalorder %s97, %s111
      %p113 = scmp.eq.s32.totalorder %s24, 0
      %p114 = por %p112, %p113
      %s116 = sadd.s32 %s115, 1
      %p119 = scmp.eq.s32.totalorder %s18, 1
      %p120 = scmp.ne.s32.totalorder %s115, %s117
      %p121 = scmp.eq.s32.totalorder %s18, 0
      %p122 = por %p120, %p121
      %p123 = scmp.ne.s32.totalorder %s115, %s117
      %p124 = scmp.eq.s32.totalorder %s23, 1
      %p125 = por %p123, %p124
      %p126 = scmp.ne.s32.totalorder %s117, %s118
      %p127 = scmp.eq.s32.totalorder %s23, 0
      %p128 = por %p126, %p127
      %p129 = scmp.ne.s32.totalorder %s117, %s118
      %p130 = scmp.eq.s32.totalorder %s24, 1
      %p131 = por %p129, %p130
      %p133 = scmp.ne.s32.totalorder %s118, %s132
      %p134 = scmp.eq.s32.totalorder %s24, 0
      %p135 = por %p133, %p134
      %s136 = ssub.s32 %s18, %s25
      %p137 = scmp.eq.s32.totalorder %s136, 0
      %s139 = sadd.s32 %s138, 1
      %s140 = scalar_select %p137, %s138, %s139
      %p143 = pneg %p137
      %p144 = scmp.eq.s32.totalorder %s18, 1
      %p145 = por %p143, %p144
      %p146 = scmp.ne.s32.totalorder %s138, %s141
      %p147 = scmp.eq.s32.totalorder %s18, 0
      %p148 = por %p146, %p147
      %p149 = scmp.ne.s32.totalorder %s138, %s141
      %p150 = scmp.eq.s32.totalorder %s23, 1
      %p151 = por %p149, %p150
      %p152 = scmp.ne.s32.totalorder %s141, %s142
      %p153 = scmp.eq.s32.totalorder %s23, 0
      %p154 = por %p152, %p153
      %p155 = scmp.ne.s32.totalorder %s141, %s142
      %p156 = scmp.eq.s32.totalorder %s24, 1
      %p157 = por %p155, %p156
      %p159 = scmp.ne.s32.totalorder %s142, %s158
      %p160 = scmp.eq.s32.totalorder %s24, 0
      %p161 = por %p159, %p160
      %p162 = scmp.le.s32.totalorder 1, %s18
      %p163 = scmp.lt.s32.totalorder %s18, 3
      %p164 = pnand %p162, %p163
      %p165 = pneg %p164
      // Predicated region
      $region9: #{tpu_custom_call.1} parent=5 // pred_check
        _
      $region10: #{tpu_custom_call.1} parent=5 // pred_check_branch
        %167 = sbr.rel (%p164) target = $region12
      $region11: #{tpu_custom_call.1} parent=5 // pred_region
        %s168 = ssub.s32 %s18, 1
        // Predicated region
        $region13: #{tpu_custom_call.1} parent=11 // pred_check
          %p169 = pneg %p65
        $region14: #{tpu_custom_call.1} parent=11 // pred_check_branch
          %171 = sbr.rel (%p169) target = $region16
        $region15: #{tpu_custom_call.1} parent=11 // pred_region
          %s173 = ssub.s32 1024, 1024
          %174 = vsyncadd [#allocation6], %s173
          %s175 = sshll.u32 [#allocation5], 4
          %s176 = int_to_ptr.vmem [resolvable:$true] %s175
          %181 = dma.hbm_to_vmem [thread:$0]  %s1, 1024, %s176, [#allocation6], 128, 128, 8
        $region16: #{tpu_custom_call.1} parent=11 // pred_fallthru
          _
        // Predicated region
        $region17: #{tpu_custom_call.1} parent=11 // pred_check
          %p182 = pneg %p86
        $region18: #{tpu_custom_call.1} parent=11 // pred_check_branch
          %184 = sbr.rel (%p182) target = $region20
        $region19: #{tpu_custom_call.1} parent=11 // pred_region
          _
        $region20: #{tpu_custom_call.1} parent=11 // pred_fallthru
          _
        // Predicated region
        $region21: #{tpu_custom_call.1} parent=11 // pred_check
          %p185 = pneg %p107
        $region22: #{tpu_custom_call.1} parent=11 // pred_check_branch
          %187 = sbr.rel (%p185) target = $region24
        $region23: #{tpu_custom_call.1} parent=11 // pred_region
          %s189 = ssub.s32 1024, 1024
          %190 = vsyncadd [#allocation6], %s189
          %s191 = sshll.u32 [#allocation7], 4
          %s192 = int_to_ptr.vmem [resolvable:$true] %s191
          %197 = dma.hbm_to_vmem [thread:$0]  %s3, 1024, %s192, [#allocation6], 128, 128, 8
        $region24: #{tpu_custom_call.1} parent=11 // pred_fallthru
          _
        // Predicated region
        $region25: #{tpu_custom_call.1} parent=11 // pred_check
          %p198 = pneg %p128
        $region26: #{tpu_custom_call.1} parent=11 // pred_check_branch
          %200 = sbr.rel (%p198) target = $region28
        $region27: #{tpu_custom_call.1} parent=11 // pred_region
          _
        $region28: #{tpu_custom_call.1} parent=11 // pred_fallthru
          _
      $region12: #{tpu_custom_call.1} parent=5 // pred_fallthru
        _
      %p201 = scmp.lt.s32.totalorder %s18, 2
      // Predicated region
      $region29: #{tpu_custom_call.1} parent=5 // pred_check
        %p202 = pneg %p201
      $region30: #{tpu_custom_call.1} parent=5 // pred_check_branch
        %204 = sbr.rel (%p202) target = $region32
      $region31: #{tpu_custom_call.1} parent=5 // pred_region
        // Predicated region
        $region33: #{tpu_custom_call.1} parent=31 // pred_check
          %p205 = pneg %p38
        $region34: #{tpu_custom_call.1} parent=31 // pred_check_branch
          %207 = sbr.rel (%p205) target = $region36
        $region35: #{tpu_custom_call.1} parent=31 // pred_region
          %s208 = sand.u32 %s28, 1
          %s209 = scalar_lea.sflag [#allocation3], %s208
          %s210 = sand.u32 %s28, 1
          %s211 = smul.addr %s210, 256
          %s212 = scalar_lea.vmem [#allocation2], %s211
          %s213 = smul.u32 2, %s18
          %s215 = ssub.s32 4096, 4096
          %216 = vsyncadd %s209, %s215
          %s217 = smul.addr %s213, 16
          %s218 = smul.addr %s217, 128
          %s219 = scalar_lea.hbm %s0, %s218
          %s220 = sshll.u32 %s212, 4
          %s221 = int_to_ptr.vmem [resolvable:$true] %s220
          %226 = dma.hbm_to_vmem [thread:$0]  %s219, 4096, %s221, %s209, 256, 256, 16
        $region36: #{tpu_custom_call.1} parent=31 // pred_fallthru
          _
      $region32: #{tpu_custom_call.1} parent=5 // pred_fallthru
        _
      %p227 = scmp.le.s32.totalorder 1, %s18
      %p228 = scmp.lt.s32.totalorder %s18, 3
      %p229 = pnand %p227, %p228
      %p230 = pneg %p229
      // Predicated region
      $region37: #{tpu_custom_call.1} parent=5 // pred_check
        _
      $region38: #{tpu_custom_call.1} parent=5 // pred_check_branch
        %232 = sbr.rel (%p229) target = $region40
      $region39: #{tpu_custom_call.1} parent=5 // pred_region
        %s233 = ssub.s32 %s18, 1
        %s234 = sand.u32 %s31, 1
        %s235 = scalar_lea.sflag [#allocation3], %s234
        %s236 = sand.u32 %s31, 1
        %s237 = smul.addr %s236, 256
        %s238 = scalar_lea.vmem [#allocation2], %s237
        // Predicated region
        $region41: #{tpu_custom_call.1} parent=39 // pred_check
          %p239 = pneg %p44
        $region42: #{tpu_custom_call.1} parent=39 // pred_check_branch
          %241 = sbr.rel (%p239) target = $region44
        $region43: #{tpu_custom_call.1} parent=39 // pred_region
          %242 = dma.done %s235, 4096
        $region44: #{tpu_custom_call.1} parent=39 // pred_fallthru
          _
        // Predicated region
        $region45: #{tpu_custom_call.1} parent=39 // pred_check
          %p243 = pneg %p65
        $region46: #{tpu_custom_call.1} parent=39 // pred_check_branch
          %245 = sbr.rel (%p243) target = $region48
        $region47: #{tpu_custom_call.1} parent=39 // pred_region
          %246 = dma.done [#allocation6], 1024
        $region48: #{tpu_custom_call.1} parent=39 // pred_fallthru
          _
        // Predicated region
        $region49: #{tpu_custom_call.1} parent=39 // pred_check
          %p247 = pneg %p107
        $region50: #{tpu_custom_call.1} parent=39 // pred_check_branch
          %249 = sbr.rel (%p247) target = $region52
        $region51: #{tpu_custom_call.1} parent=39 // pred_region
          %250 = dma.done [#allocation6], 1024
        $region52: #{tpu_custom_call.1} parent=39 // pred_fallthru
          _
        %s251 = sand.u32 %s31, 1
        %s252 = scalar_lea.sflag [#allocation3], %s251
        %s253 = sand.u32 %s31, 1
        %s254 = smul.addr %s253, 256
        %s255 = scalar_lea.vmem [#allocation2], %s254
        %p256 = pneg %p44
        %p257 = pneg %p41
        %p258 = pneg %p65
        %p259 = pneg %p62
        %p260 = pneg %p86
        %p261 = pneg %p83
        %p262 = pneg %p107
        %p263 = pneg %p104
        %p264 = pneg %p128
        %p265 = pneg %p125
        %p266 = pneg %p154
        %p267 = pneg %p151
        %s268 = sand.u32 %s141, 1
        %s269 = scalar_lea.sflag [#allocation4], %s268
        %s270 = sand.u32 %s141, 1
        %s271 = smul.addr %s270, 256
        %s272 = scalar_lea.vmem [#allocation8], %s271
        %s273 = smul.u32 2, %s23
        %s274 = smul.u32 2, %s23
        %v275 = vld [vmem:[%s238] sm:$0xff]
        %v276 = vld [vmem:[%s238 + $0x8] sm:$0xff]
        %v277 = vld [vmem:[%s238 + $0x10] sm:$0xff]
        %v278 = vld [vmem:[%s238 + $0x18] sm:$0xff]
        %v279 = vld [vmem:[%s238 + $0x20] sm:$0xff]
        %v280 = vld [vmem:[%s238 + $0x28] sm:$0xff]
        %v281 = vld [vmem:[%s238 + $0x30] sm:$0xff]
        %v282 = vld [vmem:[%s238 + $0x38] sm:$0xff]
        %v283 = vld [vmem:[%s238 + $0x40] sm:$0xff]
        %v284 = vld [vmem:[%s238 + $0x48] sm:$0xff]
        %v285 = vld [vmem:[%s238 + $0x50] sm:$0xff]
        %v286 = vld [vmem:[%s238 + $0x58] sm:$0xff]
        %v287 = vld [vmem:[%s238 + $0x60] sm:$0xff]
        %v288 = vld [vmem:[%s238 + $0x68] sm:$0xff]
        %v289 = vld [vmem:[%s238 + $0x70] sm:$0xff]
        %v290 = vld [vmem:[%s238 + $0x78] sm:$0xff]
        %v291 = vld [vmem:[%s238 + $0x80] sm:$0xff]
        %v292 = vld [vmem:[%s238 + $0x88] sm:$0xff]
        %v293 = vld [vmem:[%s238 + $0x90] sm:$0xff]
        %v294 = vld [vmem:[%s238 + $0x98] sm:$0xff]
        %v295 = vld [vmem:[%s238 + $0xa0] sm:$0xff]
        %v296 = vld [vmem:[%s238 + $0xa8] sm:$0xff]
        %v297 = vld [vmem:[%s238 + $0xb0] sm:$0xff]
        %v298 = vld [vmem:[%s238 + $0xb8] sm:$0xff]
        %v299 = vld [vmem:[%s238 + $0xc0] sm:$0xff]
        %v300 = vld [vmem:[%s238 + $0xc8] sm:$0xff]
        %v301 = vld [vmem:[%s238 + $0xd0] sm:$0xff]
        %v302 = vld [vmem:[%s238 + $0xd8] sm:$0xff]
        %v303 = vld [vmem:[%s238 + $0xe0] sm:$0xff]
        %v304 = vld [vmem:[%s238 + $0xe8] sm:$0xff]
        %v305 = vld [vmem:[%s238 + $0xf0] sm:$0xff]
        %v306 = vld [vmem:[%s238 + $0xf8] sm:$0xff]
        %v307 = vadd.f32 %v275, %v276
        %308 = vadd.xlane.f32.xlu0 %v307
        %v309 = vpop.xlane.xlu0 %308
        %v310 = vadd.f32 %v277, %v278
        %311 = vadd.xlane.f32.xlu0 %v310
        %v312 = vpop.xlane.xlu0 %311
        %v313 = vadd.f32 %v279, %v280
        %314 = vadd.xlane.f32.xlu0 %v313
        %v315 = vpop.xlane.xlu0 %314
        %v316 = vadd.f32 %v281, %v282
        %317 = vadd.xlane.f32.xlu0 %v316
        %v318 = vpop.xlane.xlu0 %317
        %v319 = vadd.f32 %v283, %v284
        %320 = vadd.xlane.f32.xlu0 %v319
        %v321 = vpop.xlane.xlu0 %320
        %v322 = vadd.f32 %v285, %v286
        %323 = vadd.xlane.f32.xlu0 %v322
        %v324 = vpop.xlane.xlu0 %323
        %v325 = vadd.f32 %v287, %v288
        %326 = vadd.xlane.f32.xlu0 %v325
        %v327 = vpop.xlane.xlu0 %326
        %v328 = vadd.f32 %v289, %v290
        %329 = vadd.xlane.f32.xlu0 %v328
        %v330 = vpop.xlane.xlu0 %329
        %v331 = vadd.f32 %v291, %v292
        %332 = vadd.xlane.f32.xlu0 %v331
        %v333 = vpop.xlane.xlu0 %332
        %v334 = vadd.f32 %v293, %v294
        %335 = vadd.xlane.f32.xlu0 %v334
        %v336 = vpop.xlane.xlu0 %335
        %v337 = vadd.f32 %v295, %v296
        %338 = vadd.xlane.f32.xlu0 %v337
        %v339 = vpop.xlane.xlu0 %338
        %v340 = vadd.f32 %v297, %v298
        %341 = vadd.xlane.f32.xlu0 %v340
        %v342 = vpop.xlane.xlu0 %341
        %v343 = vadd.f32 %v299, %v300
        %344 = vadd.xlane.f32.xlu0 %v343
        %v345 = vpop.xlane.xlu0 %344
        %v346 = vadd.f32 %v301, %v302
        %347 = vadd.xlane.f32.xlu0 %v346
        %v348 = vpop.xlane.xlu0 %347
        %v349 = vadd.f32 %v303, %v304
        %350 = vadd.xlane.f32.xlu0 %v349
        %v351 = vpop.xlane.xlu0 %350
        %v352 = vadd.f32 %v305, %v306
        %353 = vadd.xlane.f32.xlu0 %v352
        %v354 = vpop.xlane.xlu0 %353
        %v355 = vld [vmem:[#allocation5] sm:$0xff]
        %v356 = vld [vmem:[#allocation5 + $0x8] sm:$0xff]
        %v357 = vld [vmem:[#allocation5 + $0x10] sm:$0xff]
        %v358 = vld [vmem:[#allocation5 + $0x18] sm:$0xff]
        %v359 = vld [vmem:[#allocation5 + $0x20] sm:$0xff]
        %v360 = vld [vmem:[#allocation5 + $0x28] sm:$0xff]
        %v361 = vld [vmem:[#allocation5 + $0x30] sm:$0xff]
        %v362 = vld [vmem:[#allocation5 + $0x38] sm:$0xff]
        %v363 = vld [vmem:[%s2] sm:$0x1]
        %v365 = vlaneseq
        %v366 = vshrl.u32 %v365, 7
        %v367 = vsub.s32 0, %v366
        %v368 = vrot.slane %v363, %v367
        %v386 = vlaneseq
        %v387 = vand.u32 %v386, 127
        %v388 = vlaneseq
        %v389 = vshrl.u32 %v388, 7
        %v390 = vsub.s32 %v387, %v389
        %v391 = vrot.slane %v309, %v390
        %v392 = vadd.s32 %v387, 4294967288
        %v393 = vlaneseq
        %v394 = vshrl.u32 %v393, 7
        %v395 = vsub.s32 %v392, %v394
        %v396 = vrot.slane %v312, %v395
        %vm397 = vcmask 130112
        %v398 = vsel %vm397, %v396, %v391
        %v399 = vadd.s32 %v387, 4294967280
        %v400 = vlaneseq
        %v401 = vshrl.u32 %v400, 7
        %v402 = vsub.s32 %v399, %v401
        %v403 = vrot.slane %v315, %v402
        %vm404 = vcmask 195712
        %v405 = vsel %vm404, %v403, %v398
        %v406 = vadd.s32 %v387, 4294967272
        %v407 = vlaneseq
        %v408 = vshrl.u32 %v407, 7
        %v409 = vsub.s32 %v406, %v408
        %v410 = vrot.slane %v318, %v409
        %vm411 = vcmask 261312
        %v412 = vsel %vm411, %v410, %v405
        %v413 = vadd.s32 %v387, 4294967264
        %v414 = vlaneseq
        %v415 = vshrl.u32 %v414, 7
        %v416 = vsub.s32 %v413, %v415
        %v417 = vrot.slane %v321, %v416
        %vm418 = vcmask 326912
        %v419 = vsel %vm418, %v417, %v412
        %v420 = vadd.s32 %v387, 4294967256
        %v421 = vlaneseq
        %v422 = vshrl.u32 %v421, 7
        %v423 = vsub.s32 %v420, %v422
        %v424 = vrot.slane %v324, %v423
        %vm425 = vcmask 392512
        %v426 = vsel %vm425, %v424, %v419
        %v427 = vadd.s32 %v387, 4294967248
        %v428 = vlaneseq
        %v429 = vshrl.u32 %v428, 7
        %v430 = vsub.s32 %v427, %v429
        %v431 = vrot.slane %v327, %v430
        %vm432 = vcmask 458112
        %v433 = vsel %vm432, %v431, %v426
        %v434 = vadd.s32 %v387, 4294967240
        %v435 = vlaneseq
        %v436 = vshrl.u32 %v435, 7
        %v437 = vsub.s32 %v434, %v436
        %v438 = vrot.slane %v330, %v437
        %vm439 = vcmask 523712
        %v440 = vsel %vm439, %v438, %v433
        %v441 = vlaneseq
        %v442 = vshrl.u32 %v441, 7
        %v443 = vsub.s32 %v387, %v442
        %v444 = vrot.slane %v333, %v443
        %v445 = vlaneseq
        %v446 = vshrl.u32 %v445, 7
        %v447 = vsub.s32 %v392, %v446
        %v448 = vrot.slane %v336, %v447
        %v449 = vsel %vm397, %v448, %v444
        %v450 = vlaneseq
        %v451 = vshrl.u32 %v450, 7
        %v452 = vsub.s32 %v399, %v451
        %v453 = vrot.slane %v339, %v452
        %v454 = vsel %vm404, %v453, %v449
        %v455 = vlaneseq
        %v456 = vshrl.u32 %v455, 7
        %v457 = vsub.s32 %v406, %v456
        %v458 = vrot.slane %v342, %v457
        %v459 = vsel %vm411, %v458, %v454
        %v460 = vlaneseq
        %v461 = vshrl.u32 %v460, 7
        %v462 = vsub.s32 %v413, %v461
        %v463 = vrot.slane %v345, %v462
        %v464 = vsel %vm418, %v463, %v459
        %v465 = vlaneseq
        %v466 = vshrl.u32 %v465, 7
        %v467 = vsub.s32 %v420, %v466
        %v468 = vrot.slane %v348, %v467
        %v469 = vsel %vm425, %v468, %v464
        %v470 = vlaneseq
        %v471 = vshrl.u32 %v470, 7
        %v472 = vsub.s32 %v427, %v471
        %v473 = vrot.slane %v351, %v472
        %v474 = vsel %vm432, %v473, %v469
        %v475 = vlaneseq
        %v476 = vshrl.u32 %v475, 7
        %v477 = vsub.s32 %v434, %v476
        %v478 = vrot.slane %v354, %v477
        %v479 = vsel %vm439, %v478, %v474
        %vm480 = vcmask 1041409
        %v481 = vsel %vm480, %v479, %v440
        %vm482 = vcmask 523264
        %v483 = vsel %vm482, %v481, 0
        %485 = vmatprep.subr.mxu0 0.0
        %486 = vmatpush1.msra.mxu0 %v355
        %487 = vmatprep.subr.mxu0 0.0
        %488 = vmatpush1.msra.mxu0 %v356
        %489 = vmatprep.subr.mxu0 0.0
        %490 = vmatpush1.msra.mxu0 %v357
        %491 = vmatprep.subr.mxu0 0.0
        %492 = vmatpush1.msra.mxu0 %v358
        %493 = vmatprep.subr.mxu0 0.0
        %494 = vmatpush1.msra.mxu0 %v359
        %495 = vmatprep.subr.mxu0 0.0
        %496 = vmatpush1.msra.mxu0 %v360
        %497 = vmatprep.subr.mxu0 0.0
        %498 = vmatpush1.msra.mxu0 %v361
        %499 = vmatprep.subr.mxu0 0.0
        %500 = vmatpush1.msra.mxu0 %v362
        %501 = vmatprep.subr.mxu0 0.0
        %502 = vmatpush1.msra.mxu0 0.0
        %503 = vmatprep.subr.mxu0 0.0
        %504 = vmatpush1.msra.mxu0 0.0
        %505 = vmatprep.subr.mxu0 0.0
        %506 = vmatpush1.msra.mxu0 0.0
        %507 = vmatprep.subr.mxu0 0.0
        %508 = vmatpush1.msra.mxu0 0.0
        %509 = vmatprep.subr.mxu0 0.0
        %510 = vmatpush1.msra.mxu0 0.0
        %511 = vmatprep.subr.mxu0 0.0
        %512 = vmatpush1.msra.mxu0 0.0
        %513 = vmatprep.subr.mxu0 0.0
        %514 = vmatpush1.msra.mxu0 0.0
        %515 = vmatprep.subr.mxu0 0.0
        %516 = vmatpush1.msra.mxu0 0.0
        %517 = vmatprep.subr.mxu0 0.0
        %518 = vmatpush1.msra.mxu0 0.0
        %519 = vmatprep.subr.mxu0 0.0
        %520 = vmatpush1.msra.mxu0 0.0
        %521 = vmatprep.subr.mxu0 0.0
        %522 = vmatpush1.msra.mxu0 0.0
        %523 = vmatprep.subr.mxu0 0.0
        %524 = vmatpush1.msra.mxu0 0.0
        %525 = vmatprep.subr.mxu0 0.0
        %526 = vmatpush1.msra.mxu0 0.0
        %527 = vmatprep.subr.mxu0 0.0
        %528 = vmatpush1.msra.mxu0 0.0
        %529 = vmatprep.subr.mxu0 0.0
        %530 = vmatpush1.msra.mxu0 0.0
        %531 = vmatprep.subr.mxu0 0.0
        %532 = vmatpush1.msra.mxu0 0.0
        %533 = vmatprep.subr.mxu0 0.0
        %534 = vmatpush1.msra.mxu0 0.0
        %535 = vmatprep.subr.mxu0 0.0
        %536 = vmatpush1.msra.mxu0 0.0
        %537 = vmatprep.subr.mxu0 0.0
        %538 = vmatpush1.msra.mxu0 0.0
        %539 = vmatprep.subr.mxu0 0.0
        %540 = vmatpush1.msra.mxu0 0.0
        %541 = vmatprep.subr.mxu0 0.0
        %542 = vmatpush1.msra.mxu0 0.0
        %543 = vmatprep.subr.mxu0 0.0
        %544 = vmatpush1.msra.mxu0 0.0
        %545 = vmatprep.subr.mxu0 0.0
        %546 = vmatpush1.msra.mxu0 0.0
        %547 = vmatprep.subr.mxu0 0.0
        %548 = vmatpush1.msra.mxu0 0.0
        %549 = vmatprep.mubr.f32.mxu0 0.0
        %550 = vmatmul.mubr.f32.gmra.mrb[0].mxu0 %v483
        %v551 = vpop.f32.mrb[0].mxu0
        %v552 = vadd.f32 %v368, %v551
        %v553 = vpop.f32.mrb[0].mxu0
        %554 = vdwg.mxu0
        %v555 = vmax.f32 %v552, 0.0
        %v556 = vld [vmem:[#allocation7] sm:$0xff]
        %v557 = vld [vmem:[#allocation7 + $0x8] sm:$0xff]
        %v558 = vld [vmem:[#allocation7 + $0x10] sm:$0xff]
        %v559 = vld [vmem:[#allocation7 + $0x18] sm:$0xff]
        %v560 = vld [vmem:[#allocation7 + $0x20] sm:$0xff]
        %v561 = vld [vmem:[#allocation7 + $0x28] sm:$0xff]
        %v562 = vld [vmem:[#allocation7 + $0x30] sm:$0xff]
        %v563 = vld [vmem:[#allocation7 + $0x38] sm:$0xff]
        %v564 = vld [vmem:[%s4] sm:$0x1]
        %v566 = vlaneseq
        %v567 = vshrl.u32 %v566, 7
        %v568 = vsub.s32 0, %v567
        %v569 = vrot.slane %v564, %v568
        %v572 = vsel %vm482, %v555, 0
        %574 = vmatprep.subr.mxu0 0.0
        %575 = vmatpush1.msra.mxu0 %v556
        %576 = vmatprep.subr.mxu0 0.0
        %577 = vmatpush1.msra.mxu0 %v557
        %578 = vmatprep.subr.mxu0 0.0
        %579 = vmatpush1.msra.mxu0 %v558
        %580 = vmatprep.subr.mxu0 0.0
        %581 = vmatpush1.msra.mxu0 %v559
        %582 = vmatprep.subr.mxu0 0.0
        %583 = vmatpush1.msra.mxu0 %v560
        %584 = vmatprep.subr.mxu0 0.0
        %585 = vmatpush1.msra.mxu0 %v561
        %586 = vmatprep.subr.mxu0 0.0
        %587 = vmatpush1.msra.mxu0 %v562
        %588 = vmatprep.subr.mxu0 0.0
        %589 = vmatpush1.msra.mxu0 %v563
        %590 = vmatprep.subr.mxu0 0.0
        %591 = vmatpush1.msra.mxu0 0.0
        %592 = vmatprep.subr.mxu0 0.0
        %593 = vmatpush1.msra.mxu0 0.0
        %594 = vmatprep.subr.mxu0 0.0
        %595 = vmatpush1.msra.mxu0 0.0
        %596 = vmatprep.subr.mxu0 0.0
        %597 = vmatpush1.msra.mxu0 0.0
        %598 = vmatprep.subr.mxu0 0.0
        %599 = vmatpush1.msra.mxu0 0.0
        %600 = vmatprep.subr.mxu0 0.0
        %601 = vmatpush1.msra.mxu0 0.0
        %602 = vmatprep.subr.mxu0 0.0
        %603 = vmatpush1.msra.mxu0 0.0
        %604 = vmatprep.subr.mxu0 0.0
        %605 = vmatpush1.msra.mxu0 0.0
        %606 = vmatprep.subr.mxu0 0.0
        %607 = vmatpush1.msra.mxu0 0.0
        %608 = vmatprep.subr.mxu0 0.0
        %609 = vmatpush1.msra.mxu0 0.0
        %610 = vmatprep.subr.mxu0 0.0
        %611 = vmatpush1.msra.mxu0 0.0
        %612 = vmatprep.subr.mxu0 0.0
        %613 = vmatpush1.msra.mxu0 0.0
        %614 = vmatprep.subr.mxu0 0.0
        %615 = vmatpush1.msra.mxu0 0.0
        %616 = vmatprep.subr.mxu0 0.0
        %617 = vmatpush1.msra.mxu0 0.0
        %618 = vmatprep.subr.mxu0 0.0
        %619 = vmatpush1.msra.mxu0 0.0
        %620 = vmatprep.subr.mxu0 0.0
        %621 = vmatpush1.msra.mxu0 0.0
        %622 = vmatprep.subr.mxu0 0.0
        %623 = vmatpush1.msra.mxu0 0.0
        %624 = vmatprep.subr.mxu0 0.0
        %625 = vmatpush1.msra.mxu0 0.0
        %626 = vmatprep.subr.mxu0 0.0
        %627 = vmatpush1.msra.mxu0 0.0
        %628 = vmatprep.subr.mxu0 0.0
        %629 = vmatpush1.msra.mxu0 0.0
        %630 = vmatprep.subr.mxu0 0.0
        %631 = vmatpush1.msra.mxu0 0.0
        %632 = vmatprep.subr.mxu0 0.0
        %633 = vmatpush1.msra.mxu0 0.0
        %634 = vmatprep.subr.mxu0 0.0
        %635 = vmatpush1.msra.mxu0 0.0
        %636 = vmatprep.subr.mxu0 0.0
        %637 = vmatpush1.msra.mxu0 0.0
        %638 = vmatprep.mubr.f32.mxu0 0.0
        %639 = vmatmul.mubr.f32.gmra.mrb[0].mxu0 %v572
        %v640 = vpop.f32.mrb[0].mxu0
        %v641 = vadd.f32 %v569, %v640
        %v642 = vpop.f32.mrb[0].mxu0
        %643 = vdwg.mxu0
        %v644 = vxor.u32 %v641, 2147483648
        %v645 = vmul.f32 %v644, 1.442695
        %v646 = vpow.pop %v645
        %v647 = vadd.f32 %v646, 1.0
        %v648 = vrcp.pop %v647
        %v649 = vmul.f32 1.0, %v648
        %v650 = vlaneseq
        %v651 = vshrl.u32 %v650, 7
        %v652 = vsub.s32 0, %v651
        %v653 = vrot.slane %v649, %v652
        %655 = vbcast.lane.b32.xlu0 %v653, 256
        %v656 = vpop.permute.xlu0 %655
        %s658 = sor.u32 256, 8
        %659 = vbcast.lane.b32.xlu0 %v653, %s658
        %v660 = vpop.permute.xlu0 %659
        %s662 = sor.u32 256, 16
        %663 = vbcast.lane.b32.xlu0 %v653, %s662
        %v664 = vpop.permute.xlu0 %663
        %s666 = sor.u32 256, 24
        %667 = vbcast.lane.b32.xlu0 %v653, %s666
        %v668 = vpop.permute.xlu0 %667
        %s670 = sor.u32 256, 32
        %671 = vbcast.lane.b32.xlu0 %v653, %s670
        %v672 = vpop.permute.xlu0 %671
        %s674 = sor.u32 256, 40
        %675 = vbcast.lane.b32.xlu0 %v653, %s674
        %v676 = vpop.permute.xlu0 %675
        %s678 = sor.u32 256, 48
        %679 = vbcast.lane.b32.xlu0 %v653, %s678
        %v680 = vpop.permute.xlu0 %679
        %s682 = sor.u32 256, 56
        %683 = vbcast.lane.b32.xlu0 %v653, %s682
        %v684 = vpop.permute.xlu0 %683
        %v685 = vlaneseq
        %v686 = vshrl.u32 %v685, 7
        %v687 = vsub.s32 1, %v686
        %v688 = vrot.slane %v649, %v687
        %690 = vbcast.lane.b32.xlu0 %v688, 256
        %v691 = vpop.permute.xlu0 %690
        %s693 = sor.u32 256, 8
        %694 = vbcast.lane.b32.xlu0 %v688, %s693
        %v695 = vpop.permute.xlu0 %694
        %s697 = sor.u32 256, 16
        %698 = vbcast.lane.b32.xlu0 %v688, %s697
        %v699 = vpop.permute.xlu0 %698
        %s701 = sor.u32 256, 24
        %702 = vbcast.lane.b32.xlu0 %v688, %s701
        %v703 = vpop.permute.xlu0 %702
        %s705 = sor.u32 256, 32
        %706 = vbcast.lane.b32.xlu0 %v688, %s705
        %v707 = vpop.permute.xlu0 %706
        %s709 = sor.u32 256, 40
        %710 = vbcast.lane.b32.xlu0 %v688, %s709
        %v711 = vpop.permute.xlu0 %710
        %s713 = sor.u32 256, 48
        %714 = vbcast.lane.b32.xlu0 %v688, %s713
        %v715 = vpop.permute.xlu0 %714
        %s717 = sor.u32 256, 56
        %718 = vbcast.lane.b32.xlu0 %v688, %s717
        %v719 = vpop.permute.xlu0 %718
        %v720 = vmul.f32 %v275, %v656
        %v721 = vmul.f32 %v276, %v656
        %v722 = vmul.f32 %v277, %v660
        %v723 = vmul.f32 %v278, %v660
        %v724 = vmul.f32 %v279, %v664
        %v725 = vmul.f32 %v280, %v664
        %v726 = vmul.f32 %v281, %v668
        %v727 = vmul.f32 %v282, %v668
        %v728 = vmul.f32 %v283, %v672
        %v729 = vmul.f32 %v284, %v672
        %v730 = vmul.f32 %v285, %v676
        %v731 = vmul.f32 %v286, %v676
        %v732 = vmul.f32 %v287, %v680
        %v733 = vmul.f32 %v288, %v680
        %v734 = vmul.f32 %v289, %v684
        %v735 = vmul.f32 %v290, %v684
        %v736 = vmul.f32 %v291, %v691
        %v737 = vmul.f32 %v292, %v691
        %v738 = vmul.f32 %v293, %v695
        %v739 = vmul.f32 %v294, %v695
        %v740 = vmul.f32 %v295, %v699
        %v741 = vmul.f32 %v296, %v699
        %v742 = vmul.f32 %v297, %v703
        %v743 = vmul.f32 %v298, %v703
        %v744 = vmul.f32 %v299, %v707
        %v745 = vmul.f32 %v300, %v707
        %v746 = vmul.f32 %v301, %v711
        %v747 = vmul.f32 %v302, %v711
        %v748 = vmul.f32 %v303, %v715
        %v749 = vmul.f32 %v304, %v715
        %v750 = vmul.f32 %v305, %v719
        %v751 = vmul.f32 %v306, %v719
        %752 = vst [vmem:[%s272] sm:$0xff] %v720
        %753 = vst [vmem:[%s272 + $0x8] sm:$0xff] %v721
        %754 = vst [vmem:[%s272 + $0x10] sm:$0xff] %v722
        %755 = vst [vmem:[%s272 + $0x18] sm:$0xff] %v723
        %756 = vst [vmem:[%s272 + $0x20] sm:$0xff] %v724
        %757 = vst [vmem:[%s272 + $0x28] sm:$0xff] %v725
        %758 = vst [vmem:[%s272 + $0x30] sm:$0xff] %v726
        %759 = vst [vmem:[%s272 + $0x38] sm:$0xff] %v727
        %760 = vst [vmem:[%s272 + $0x40] sm:$0xff] %v728
        %761 = vst [vmem:[%s272 + $0x48] sm:$0xff] %v729
        %762 = vst [vmem:[%s272 + $0x50] sm:$0xff] %v730
        %763 = vst [vmem:[%s272 + $0x58] sm:$0xff] %v731
        %764 = vst [vmem:[%s272 + $0x60] sm:$0xff] %v732
        %765 = vst [vmem:[%s272 + $0x68] sm:$0xff] %v733
        %766 = vst [vmem:[%s272 + $0x70] sm:$0xff] %v734
        %767 = vst [vmem:[%s272 + $0x78] sm:$0xff] %v735
        %768 = vst [vmem:[%s272 + $0x80] sm:$0xff] %v736
        %769 = vst [vmem:[%s272 + $0x88] sm:$0xff] %v737
        %770 = vst [vmem:[%s272 + $0x90] sm:$0xff] %v738
        %771 = vst [vmem:[%s272 + $0x98] sm:$0xff] %v739
        %772 = vst [vmem:[%s272 + $0xa0] sm:$0xff] %v740
        %773 = vst [vmem:[%s272 + $0xa8] sm:$0xff] %v741
        %774 = vst [vmem:[%s272 + $0xb0] sm:$0xff] %v742
        %775 = vst [vmem:[%s272 + $0xb8] sm:$0xff] %v743
        %776 = vst [vmem:[%s272 + $0xc0] sm:$0xff] %v744
        %777 = vst [vmem:[%s272 + $0xc8] sm:$0xff] %v745
        %778 = vst [vmem:[%s272 + $0xd0] sm:$0xff] %v746
        %779 = vst [vmem:[%s272 + $0xd8] sm:$0xff] %v747
        %780 = vst [vmem:[%s272 + $0xe0] sm:$0xff] %v748
        %781 = vst [vmem:[%s272 + $0xe8] sm:$0xff] %v749
        %782 = vst [vmem:[%s272 + $0xf0] sm:$0xff] %v750
        %783 = vst [vmem:[%s272 + $0xf8] sm:$0xff] %v751
        %s784 = sand.u32 %s141, 1
        %s785 = scalar_lea.sflag [#allocation4], %s784
        %s786 = sand.u32 %s141, 1
        %s787 = smul.addr %s786, 256
        %s788 = scalar_lea.vmem [#allocation8], %s787
        // Predicated region
        $region53: #{tpu_custom_call.1} parent=39 // pred_check
          %p789 = pneg %p151
        $region54: #{tpu_custom_call.1} parent=39 // pred_check_branch
          %791 = sbr.rel (%p789) target = $region56
        $region55: #{tpu_custom_call.1} parent=39 // pred_region
          %s792 = smul.u32 2, %s23
          %s794 = ssub.s32 4096, 4096
          %795 = vsyncadd %s785, %s794
          %s796 = smul.addr %s792, 16
          %s797 = smul.addr %s796, 128
          %s798 = scalar_lea.hbm %s5, %s797
          %s799 = sshll.u32 %s788, 4
          %s800 = int_to_ptr.vmem [resolvable:$true] %s799
          %805 = dma.vmem_to_hbm [thread:$0]  %s800, 4096, %s798, %s785, 256, 256, 16
        $region56: #{tpu_custom_call.1} parent=39 // pred_fallthru
          _
      $region40: #{tpu_custom_call.1} parent=5 // pred_fallthru
        _
      %p806 = scmp.le.s32.totalorder 2, %s18
      // Predicated region
      $region57: #{tpu_custom_call.1} parent=5 // pred_check
        %p807 = pneg %p806
      $region58: #{tpu_custom_call.1} parent=5 // pred_check_branch
        %809 = sbr.rel (%p807) target = $region60
      $region59: #{tpu_custom_call.1} parent=5 // pred_region
        %s810 = ssub.s32 %s18, 2
        // Predicated region
        $region61: #{tpu_custom_call.1} parent=59 // pred_check
          %p811 = pneg %p157
        $region62: #{tpu_custom_call.1} parent=59 // pred_check_branch
          %813 = sbr.rel (%p811) target = $region64
        $region63: #{tpu_custom_call.1} parent=59 // pred_region
          %s814 = sand.u32 %s142, 1
          %s815 = scalar_lea.sflag [#allocation4], %s814
          %s816 = sand.u32 %s142, 1
          %s817 = smul.addr %s816, 256
          %s818 = scalar_lea.vmem [#allocation8], %s817
          %819 = dma.done %s815, 4096
        $region64: #{tpu_custom_call.1} parent=59 // pred_fallthru
          _
      $region60: #{tpu_custom_call.1} parent=5 // pred_fallthru
        _
    $region6: #{tpu_custom_call.1} parent=1 // loop_footer
      %s22 = sadd.s32 1, %s18
    $region7: #{tpu_custom_call.1} parent=1 // loop_footer_branch
      %17 = sbr.rel target = $region3
    $region8: #{tpu_custom_call.1} parent=1 // loop_exit
      _
    %820 = vsyncpa [#allocation3], 1
    %s821 = scalar_lea.sflag [#allocation3], 1
    %822 = vsyncpa %s821, 1
    %823 = vsyncpa [#allocation6], 1
    %824 = vsyncpa [#allocation4], 1
    %s825 = scalar_lea.sflag [#allocation4], 1
    %826 = vsyncpa %s825, 1

</llo_original>
